<compile_context>
chip_gen: v7x
topology: tpu7x:2x2x1
jax: 0.10.0
libtpu: 0.0.40
codegen_flags: <defaults>
</compile_context>

<pallas_src>
import functools

import jax
import jax.numpy as jnp
from jax.experimental import pallas as pl
from jax.experimental.pallas import tpu as pltpu


# ----------------------------- config (synthetic) ----------------------------
# config.model_params.layer_sizes from config.yaml — chosen deterministically
# here since this is a synthetic kernel.
LAYER_SIZES = [32, 32]
EIGEN_M_SIZE = 6                      # -> input_size = 2*6 + 4 = 16
INPUT_SIZE = 2 * EIGEN_M_SIZE + 4

_LANES = 128                          # TPU vreg lane width


# -------------------------------- kernels ------------------------------------
def _mlp_mean_single_kernel(*refs, num_layers, inv_n):
    """Single grid step: refs = (x_ref, w0, b0, w1, b1, ..., o_ref)."""
    x_ref = refs[0]
    wb_refs = refs[1:1 + 2 * num_layers]
    o_ref = refs[1 + 2 * num_layers]

    h = x_ref[...]
    for l in range(num_layers):
        w = wb_refs[2 * l][...]
        b = wb_refs[2 * l + 1][...]            # (1, out) — broadcasts over rows
        h = jnp.maximum(
            jnp.dot(h, w, preferred_element_type=jnp.float32) + b, 0.0)

    # mean over dim 0 in one shot: sum rows, scale, store (lane-dense).
    o_ref[...] = jnp.sum(h, axis=0, keepdims=True) * inv_n


def _mlp_mean_tiled_kernel(*refs, num_layers, n_valid, inv_n, tile_m):
    """Fallback for large N: refs = (x_ref, w0, b0, ..., o_ref, acc_ref).

    x may be zero-padded up to a multiple of tile_m; padded rows are masked
    out before the row-sum (ReLU(0 @ W + b) != 0, so masking is required).
    """
    x_ref = refs[0]
    wb_refs = refs[1:1 + 2 * num_layers]
    o_ref = refs[1 + 2 * num_layers]
    acc_ref = refs[2 + 2 * num_layers]

    i = pl.program_id(0)

    @pl.when(i == 0)
    def _():
        acc_ref[...] = jnp.zeros_like(acc_ref)

    h = x_ref[...]
    for l in range(num_layers):
        w = wb_refs[2 * l][...]
        b = wb_refs[2 * l + 1][...]
        h = jnp.maximum(
            jnp.dot(h, w, preferred_element_type=jnp.float32) + b, 0.0)

    # mask rows beyond the true sample count (padding)
    row = i * tile_m + jax.lax.broadcasted_iota(jnp.int32, h.shape, 0)
    h = jnp.where(row < n_valid, h, 0.0)

    acc_ref[...] += jnp.sum(h, axis=0, keepdims=True)

    @pl.when(i == pl.num_programs(0) - 1)
    def _():
        o_ref[...] = acc_ref[...] * inv_n


# -------------------------------- wrapper -------------------------------------
def non_graph_encoder_forward(x, weights, biases, *,
                              max_single_tile=2048, tile_m=1024):
    """x: (N, D_in) float32. weights[l]: (in_l, out_l). biases[l]: (out_l,).
    Returns mean(MLP(x), axis=0) of shape (out_last,)."""
    n, d_in = x.shape
    num_layers = len(weights)
    out_dim = weights[-1].shape[1]

    # Lane-dense final store: zero-pad the last layer's output features up to
    # a multiple of 128.  ReLU(x @ 0 + 0) = 0, and the padded columns are
    # sliced off below, so semantics are unchanged.
    out_pad = pl.cdiv(out_dim, _LANES) * _LANES
    if out_pad != out_dim:
        weights = list(weights[:-1]) + [
            jnp.pad(weights[-1], ((0, 0), (0, out_pad - out_dim)))]
        biases = list(biases[:-1]) + [
            jnp.pad(biases[-1], ((0, out_pad - out_dim),))]
    else:
        weights = list(weights)
        biases = list(biases)

    # biases as (1, out) so they are 2-D VMEM tiles
    biases_2d = [b.reshape(1, -1) for b in biases]
    wb_flat = [a for pair in zip(weights, biases_2d) for a in pair]

    # Advisory cost estimate so XLA can schedule/overlap this small call.
    flops = 2 * n * sum(w.shape[0] * w.shape[1] for w in weights)
    bytes_accessed = (x.size * 4
                      + sum(w.size * 4 for w in weights)
                      + sum(b.size * 4 for b in biases)
                      + out_pad * 4)
    cost = pl.CostEstimate(flops=flops, transcendentals=0,
                           bytes_accessed=bytes_accessed)

    if n <= max_single_tile:
        # ---- single-step path: whole problem in one grid iteration ----
        kernel = functools.partial(
            _mlp_mean_single_kernel, num_layers=num_layers, inv_n=1.0 / n)

        in_specs = [pl.BlockSpec((n, d_in), lambda i: (0, 0))]
        for w, b in zip(weights, biases_2d):
            in_specs.append(pl.BlockSpec(w.shape, lambda i: (0, 0)))
            in_specs.append(pl.BlockSpec(b.shape, lambda i: (0, 0)))

        out = pl.pallas_call(
            kernel,
            out_shape=jax.ShapeDtypeStruct((1, out_pad), jnp.float32),
            grid_spec=pl.GridSpec(
                grid=(1,),
                in_specs=in_specs,
                out_specs=pl.BlockSpec((1, out_pad), lambda i: (0, 0)),
            ),
            compiler_params=pltpu.CompilerParams(
                dimension_semantics=("arbitrary",)),
            cost_estimate=cost,
        )(x, *wb_flat)
        return out[0, :out_dim]

    # ---- large-N path: big row tiles, pad + mask instead of asserting ----
    n_pad = pl.cdiv(n, tile_m) * tile_m
    if n_pad != n:
        x = jnp.pad(x, ((0, n_pad - n), (0, 0)))

    kernel = functools.partial(
        _mlp_mean_tiled_kernel, num_layers=num_layers,
        n_valid=n, inv_n=1.0 / n, tile_m=tile_m)

    in_specs = [pl.BlockSpec((tile_m, d_in), lambda i: (i, 0))]
    for w, b in zip(weights, biases_2d):
        in_specs.append(pl.BlockSpec(w.shape, lambda i: (0, 0)))
        in_specs.append(pl.BlockSpec(b.shape, lambda i: (0, 0)))

    out = pl.pallas_call(
        kernel,
        out_shape=jax.ShapeDtypeStruct((1, out_pad), jnp.float32),
        grid_spec=pl.GridSpec(
            grid=(n_pad // tile_m,),
            in_specs=in_specs,
            out_specs=pl.BlockSpec((1, out_pad), lambda i: (0, 0)),
            scratch_shapes=[pltpu.VMEM((1, out_pad), jnp.float32)],
        ),
        compiler_params=pltpu.CompilerParams(
            dimension_semantics=("arbitrary",)),   # accumulator across grid
        cost_estimate=cost,
    )(x, *wb_flat)
    return out[0, :out_dim]


# ------------------------------ reference (JAX) -------------------------------
def _reference(x, weights, biases):
    h = x
    for w, b in zip(weights, biases):
        h = jnp.maximum(h @ w + b, 0.0)
    return jnp.mean(h, axis=0)


def _make_params(key, d_in, layer_sizes):
    keys = jax.random.split(key, 2 * len(layer_sizes))
    weights, biases = [], []
    in_dim = d_in
    for li, out_dim in enumerate(layer_sizes):
        scale = 1.0 / jnp.sqrt(jnp.float32(in_dim))
        weights.append(jax.random.uniform(keys[2 * li], (in_dim, out_dim),
                                          jnp.float32, minval=-scale, maxval=scale))
        biases.append(jax.random.uniform(keys[2 * li + 1], (out_dim,),
                                         jnp.float32, minval=-scale, maxval=scale))
        in_dim = out_dim
    return weights, biases


# ----------------------------------- main -------------------------------------
if __name__ == "__main__":
    key = jax.random.PRNGKey(0)
    k_x, k_p, k_x2 = jax.random.split(key, 3)

    N = 64                                   # number of samples (reduced by mean)
    D_IN = INPUT_SIZE                        # 2 * eigen_m_size + 4 = 16

    x = jax.random.normal(k_x, (N, D_IN), dtype=jnp.float32)
    weights, biases = _make_params(k_p, D_IN, LAYER_SIZES)

    # Primary path: single-step kernel (N fits in one tile).
    y = non_graph_encoder_forward(x, weights, biases)
    jax.block_until_ready(y)
    y_ref = _reference(x, weights, biases)
    assert y.shape == (LAYER_SIZES[-1],)
    assert jnp.allclose(y, y_ref, atol=1e-5, rtol=1e-5), "mismatch vs reference"

    # Also exercise the large-N tiled path (forced small tiles) to verify the
    # pad + mask accumulator logic on a non-divisible sample count.
    x2 = jax.random.normal(k_x2, (100, D_IN), dtype=jnp.float32)
    y2 = non_graph_encoder_forward(x2, weights, biases,
                                   max_single_tile=32, tile_m=32)
    jax.block_until_ready(y2)
    y2_ref = _reference(x2, weights, biases)
    assert jnp.allclose(y2, y2_ref, atol=1e-5, rtol=1e-5), "tiled-path mismatch"

    print("KERNEL_OK")
</pallas_src>

<mosaic_0001>
module attributes {stable_mosaic.version = 11 : i64} {
  func.func @_mlp_mean_single_kernel(%arg0: i32, %arg1: memref<64x16xf32, #tpu.memory_space<vmem>>, %arg2: memref<16x32xf32, #tpu.memory_space<vmem>>, %arg3: memref<1x32xf32, #tpu.memory_space<vmem>>, %arg4: memref<32x128xf32, #tpu.memory_space<vmem>>, %arg5: memref<1x128xf32, #tpu.memory_space<vmem>>, %arg6: memref<1x128xf32, #tpu.memory_space<vmem>>) attributes {dimension_semantics = [#tpu.dimension_semantics<arbitrary>], iteration_bounds = array<i64: 1>, scalar_prefetch = 0 : i64, scratch_operands = 0 : i64, tpu.core_type = #tpu.core_type<tc>, window_params = [{pipeline_mode = #tpu.pipeline_mode<synchronous>, transform_indices = @transform_0, window_bounds = array<i64: 64, 16>}, {pipeline_mode = #tpu.pipeline_mode<synchronous>, transform_indices = @transform_1, window_bounds = array<i64: 16, 32>}, {pipeline_mode = #tpu.pipeline_mode<synchronous>, transform_indices = @transform_2, window_bounds = array<i64: 1, 32>}, {pipeline_mode = #tpu.pipeline_mode<synchronous>, transform_indices = @transform_3, window_bounds = array<i64: 32, 128>}, {pipeline_mode = #tpu.pipeline_mode<synchronous>, transform_indices = @transform_4, window_bounds = array<i64: 1, 128>}, {pipeline_mode = #tpu.pipeline_mode<synchronous>, transform_indices = @transform_5, window_bounds = array<i64: 1, 128>}]} {
    %c0 = arith.constant 0 : index
    %c0_0 = arith.constant 0 : index
    %0 = vector.load %arg1[%c0, %c0_0] : memref<64x16xf32, #tpu.memory_space<vmem>>, vector<64x16xf32>
    %c0_1 = arith.constant 0 : index
    %c0_2 = arith.constant 0 : index
    %1 = vector.load %arg2[%c0_1, %c0_2] : memref<16x32xf32, #tpu.memory_space<vmem>>, vector<16x32xf32>
    %c0_3 = arith.constant 0 : index
    %c0_4 = arith.constant 0 : index
    %2 = vector.load %arg3[%c0_3, %c0_4] : memref<1x32xf32, #tpu.memory_space<vmem>>, vector<1x32xf32>
    %cst = arith.constant dense<0.000000e+00> : vector<64x32xf32>
    %3 = tpu.matmul %0, %1, %cst {dimension_numbers = #tpu.dot_dimension_numbers<[1], [0], [0], [1], [0, 0, 1, 1], [], []>} : vector<64x16xf32>, vector<16x32xf32>, vector<64x32xf32> -> vector<64x32xf32>
    %4 = vector.broadcast %2 : vector<1x32xf32> to vector<64x32xf32>
    %5 = arith.addf %3, %4 : vector<64x32xf32>
    %cst_5 = arith.constant 0.000000e+00 : f32
    %6 = vector.broadcast %cst_5 : f32 to vector<64x32xf32>
    %7 = arith.maximumf %5, %6 : vector<64x32xf32>
    %c0_6 = arith.constant 0 : index
    %c0_7 = arith.constant 0 : index
    %8 = vector.load %arg4[%c0_6, %c0_7] : memref<32x128xf32, #tpu.memory_space<vmem>>, vector<32x128xf32>
    %c0_8 = arith.constant 0 : index
    %c0_9 = arith.constant 0 : index
    %9 = vector.load %arg5[%c0_8, %c0_9] : memref<1x128xf32, #tpu.memory_space<vmem>>, vector<1x128xf32>
    %cst_10 = arith.constant dense<0.000000e+00> : vector<64x128xf32>
    %10 = tpu.matmul %7, %8, %cst_10 {dimension_numbers = #tpu.dot_dimension_numbers<[1], [0], [0], [1], [0, 0, 1, 1], [], []>} : vector<64x32xf32>, vector<32x128xf32>, vector<64x128xf32> -> vector<64x128xf32>
    %11 = vector.broadcast %9 : vector<1x128xf32> to vector<64x128xf32>
    %12 = arith.addf %10, %11 : vector<64x128xf32>
    %cst_11 = arith.constant 0.000000e+00 : f32
    %13 = vector.broadcast %cst_11 : f32 to vector<64x128xf32>
    %14 = arith.maximumf %12, %13 : vector<64x128xf32>
    %cst_12 = arith.constant dense<0.000000e+00> : vector<128xf32>
    %15 = vector.multi_reduction <add>, %14, %cst_12 [0] : vector<64x128xf32> to vector<128xf32>
    %16 = vector.shape_cast %15 : vector<128xf32> to vector<1x128xf32>
    %cst_13 = arith.constant 1.562500e-02 : f32
    %17 = vector.broadcast %cst_13 : f32 to vector<1x128xf32>
    %18 = arith.mulf %16, %17 : vector<1x128xf32>
    %c0_14 = arith.constant 0 : index
    %c0_15 = arith.constant 0 : index
    %19 = vector.load %arg6[%c0_14, %c0_15] : memref<1x128xf32, #tpu.memory_space<vmem>>, vector<1x128xf32>
    tpu.vector_store %arg6[%c0_14, %c0_15], %18 {strides = array<i32>} : memref<1x128xf32, #tpu.memory_space<vmem>>, vector<1x128xf32>,
    return
  }
  func.func @transform_0(%arg0: i32) -> (i32, i32) {
    %c0_i32 = arith.constant 0 : i32
    %c0_i32_0 = arith.constant 0 : i32
    %c0_i32_1 = arith.constant 0 : i32
    return %c0_i32, %c0_i32_0 : i32, i32
  }
  func.func @transform_1(%arg0: i32) -> (i32, i32) {
    %c0_i32 = arith.constant 0 : i32
    %c0_i32_0 = arith.constant 0 : i32
    %c0_i32_1 = arith.constant 0 : i32
    return %c0_i32, %c0_i32_0 : i32, i32
  }
  func.func @transform_2(%arg0: i32) -> (i32, i32) {
    %c0_i32 = arith.constant 0 : i32
    %c0_i32_0 = arith.constant 0 : i32
    %c0_i32_1 = arith.constant 0 : i32
    return %c0_i32, %c0_i32_0 : i32, i32
  }
  func.func @transform_3(%arg0: i32) -> (i32, i32) {
    %c0_i32 = arith.constant 0 : i32
    %c0_i32_0 = arith.constant 0 : i32
    %c0_i32_1 = arith.constant 0 : i32
    return %c0_i32, %c0_i32_0 : i32, i32
  }
  func.func @transform_4(%arg0: i32) -> (i32, i32) {
    %c0_i32 = arith.constant 0 : i32
    %c0_i32_0 = arith.constant 0 : i32
    %c0_i32_1 = arith.constant 0 : i32
    return %c0_i32, %c0_i32_0 : i32, i32
  }
  func.func @transform_5(%arg0: i32) -> (i32, i32) {
    %c0_i32 = arith.constant 0 : i32
    %c0_i32_0 = arith.constant 0 : i32
    %c0_i32_1 = arith.constant 0 : i32
    return %c0_i32, %c0_i32_0 : i32, i32
  }
}

</mosaic_0001>

<llo_original>
// kernel: tpu_custom_call.1
$region0: #{tpu_custom_call.1}
  #allocation0 [shape = 'u32[]', space=smem, size = 0x4, offset = 0x4, fixed_abs, tag = 'smem constant byte address 0x4 - core index']
  #allocation1 [shape = 'u32[144,128]{1,0:T(1,128)}', space=vmem, size = 0x12000, scoped, tag = 'internal scratch']
  %s0 = inlined_call_operand.vmem [shape: f32[64,16], index: 0, kind: input, shape index: {}]
  %s1 = inlined_call_operand.vmem [shape: f32[16,32], index: 1, kind: input, shape index: {}]
  %s2 = inlined_call_operand.vmem [shape: f32[1,32], index: 2, kind: input, shape index: {}]
  %s3 = inlined_call_operand.vmem [shape: f32[32,128], index: 3, kind: input, shape index: {}]
  %s4 = inlined_call_operand.vmem [shape: f32[1,128], index: 4, kind: input, shape index: {}]
  %s5 = inlined_call_operand.hbm [shape: f32[1,128], index: 5, kind: output, shape index: {}]
  %s6 = sld [smem:[#allocation0]]
  $region30: #{tpu_custom_call.1} parent=0
    _
  %s8 = ssub.s32 1, %s6
  %s9 = scalar_select 0, %s8, %s6
  $region1: #{tpu_custom_call.1} parent=0
    #allocation2 [shape = 'u8[512]{0}', space=vmem, size = 0x400, scoped, tag = 'output window, operand 0, single buffered']
    #allocation3 [shape = 's32[1]{0}', space=sflag, size = 0x4, scoped, tag = 'scoped memory for tpu_custom_call.1']
    %10 = vsyncpa [#allocation3], 0
    // Predicated region
    $region2: #{tpu_custom_call.1} parent=1 // pred_check
      _
    $region3: #{tpu_custom_call.1} parent=1 // pred_check_branch
      %12 = sbr.rel (0) target = $region5
    $region4: #{tpu_custom_call.1} parent=1 // pred_region
      _
    $region5: #{tpu_custom_call.1} parent=1 // pred_fallthru
      _
    // Predicated region
    $region6: #{tpu_custom_call.1} parent=1 // pred_check
      _
    $region7: #{tpu_custom_call.1} parent=1 // pred_check_branch
      %14 = sbr.rel (0) target = $region9
    $region8: #{tpu_custom_call.1} parent=1 // pred_region
      _
    $region9: #{tpu_custom_call.1} parent=1 // pred_fallthru
      _
    // Predicated region
    $region10: #{tpu_custom_call.1} parent=1 // pred_check
      _
    $region11: #{tpu_custom_call.1} parent=1 // pred_check_branch
      %16 = sbr.rel (0) target = $region13
    $region12: #{tpu_custom_call.1} parent=1 // pred_region
      _
    $region13: #{tpu_custom_call.1} parent=1 // pred_fallthru
      _
    // Predicated region
    $region14: #{tpu_custom_call.1} parent=1 // pred_check
      _
    $region15: #{tpu_custom_call.1} parent=1 // pred_check_branch
      %18 = sbr.rel (0) target = $region17
    $region16: #{tpu_custom_call.1} parent=1 // pred_region
      _
    $region17: #{tpu_custom_call.1} parent=1 // pred_fallthru
      _
    // Predicated region
    $region18: #{tpu_custom_call.1} parent=1 // pred_check
      _
    $region19: #{tpu_custom_call.1} parent=1 // pred_check_branch
      %20 = sbr.rel (0) target = $region21
    $region20: #{tpu_custom_call.1} parent=1 // pred_region
      _
    $region21: #{tpu_custom_call.1} parent=1 // pred_fallthru
      _
    %v21 = vld [vmem:[%s0] sm:$0xff]
    %v22 = vld [vmem:[%s0 + $0x8] sm:$0xff]
    %v23 = vld [vmem:[%s0 + $0x10] sm:$0xff]
    %v24 = vld [vmem:[%s0 + $0x18] sm:$0xff]
    %v25 = vld [vmem:[%s0 + $0x20] sm:$0xff]
    %v26 = vld [vmem:[%s0 + $0x28] sm:$0xff]
    %v27 = vld [vmem:[%s0 + $0x30] sm:$0xff]
    %v28 = vld [vmem:[%s0 + $0x38] sm:$0xff]
    %v29 = vld [vmem:[%s1] sm:$0xff]
    %v30 = vld [vmem:[%s1 + $0x8] sm:$0xff]
    %v31 = vld [vmem:[%s2] sm:$0x1]
    %v33 = vlaneseq
    %v34 = vshrl.u32 %v33, 7
    %v35 = vsub.s32 0, %v34
    %v36 = vrot.slane %v31, %v35
    %vm38 = vcmask 130048
    %v40 = vsel %vm38, %v21, 0
    %v43 = vsel %vm38, %v22, 0
    %v46 = vsel %vm38, %v23, 0
    %v49 = vsel %vm38, %v24, 0
    %v52 = vsel %vm38, %v25, 0
    %v55 = vsel %vm38, %v26, 0
    %v58 = vsel %vm38, %v27, 0
    %v61 = vsel %vm38, %v28, 0
    %63 = vmatprep.subr.mxu0 0.0
    %64 = vmatpush1.msra.mxu0 %v29
    %65 = vmatprep.subr.mxu0 0.0
    %66 = vmatpush1.msra.mxu0 %v30
    %67 = vmatprep.subr.mxu0 0.0
    %68 = vmatpush1.msra.mxu0 0.0
    %69 = vmatprep.subr.mxu0 0.0
    %70 = vmatpush1.msra.mxu0 0.0
    %71 = vmatprep.subr.mxu0 0.0
    %72 = vmatpush1.msra.mxu0 0.0
    %73 = vmatprep.subr.mxu0 0.0
    %74 = vmatpush1.msra.mxu0 0.0
    %75 = vmatprep.subr.mxu0 0.0
    %76 = vmatpush1.msra.mxu0 0.0
    %77 = vmatprep.subr.mxu0 0.0
    %78 = vmatpush1.msra.mxu0 0.0
    %79 = vmatprep.subr.mxu0 0.0
    %80 = vmatpush1.msra.mxu0 0.0
    %81 = vmatprep.subr.mxu0 0.0
    %82 = vmatpush1.msra.mxu0 0.0
    %83 = vmatprep.subr.mxu0 0.0
    %84 = vmatpush1.msra.mxu0 0.0
    %85 = vmatprep.subr.mxu0 0.0
    %86 = vmatpush1.msra.mxu0 0.0
    %87 = vmatprep.subr.mxu0 0.0
    %88 = vmatpush1.msra.mxu0 0.0
    %89 = vmatprep.subr.mxu0 0.0
    %90 = vmatpush1.msra.mxu0 0.0
    %91 = vmatprep.subr.mxu0 0.0
    %92 = vmatpush1.msra.mxu0 0.0
    %93 = vmatprep.subr.mxu0 0.0
    %94 = vmatpush1.msra.mxu0 0.0
    %95 = vmatprep.subr.mxu0 0.0
    %96 = vmatpush1.msra.mxu0 0.0
    %97 = vmatprep.subr.mxu0 0.0
    %98 = vmatpush1.msra.mxu0 0.0
    %99 = vmatprep.subr.mxu0 0.0
    %100 = vmatpush1.msra.mxu0 0.0
    %101 = vmatprep.subr.mxu0 0.0
    %102 = vmatpush1.msra.mxu0 0.0
    %103 = vmatprep.subr.mxu0 0.0
    %104 = vmatpush1.msra.mxu0 0.0
    %105 = vmatprep.subr.mxu0 0.0
    %106 = vmatpush1.msra.mxu0 0.0
    %107 = vmatprep.subr.mxu0 0.0
    %108 = vmatpush1.msra.mxu0 0.0
    %109 = vmatprep.subr.mxu0 0.0
    %110 = vmatpush1.msra.mxu0 0.0
    %111 = vmatprep.subr.mxu0 0.0
    %112 = vmatpush1.msra.mxu0 0.0
    %113 = vmatprep.subr.mxu0 0.0
    %114 = vmatpush1.msra.mxu0 0.0
    %115 = vmatprep.subr.mxu0 0.0
    %116 = vmatpush1.msra.mxu0 0.0
    %117 = vmatprep.subr.mxu0 0.0
    %118 = vmatpush1.msra.mxu0 0.0
    %119 = vmatprep.subr.mxu0 0.0
    %120 = vmatpush1.msra.mxu0 0.0
    %121 = vmatprep.subr.mxu0 0.0
    %122 = vmatpush1.msra.mxu0 0.0
    %123 = vmatprep.subr.mxu0 0.0
    %124 = vmatpush1.msra.mxu0 0.0
    %125 = vmatprep.subr.mxu0 0.0
    %126 = vmatpush1.msra.mxu0 0.0
    %127 = vmatprep.mubr.f32.mxu0 0.0
    %128 = vmatmul.mubr.f32.gmra.mrb[0].mxu0 %v40
    %v129 = vpop.f32.mrb[0].mxu0
    %v130 = vadd.f32 %v36, %v129
    %v131 = vpop.f32.mrb[0].mxu0
    %132 = vmatprep.mubr.f32.mxu0 0.0
    %133 = vmatmul.mubr.f32.gmra.mrb[0].mxu0 %v43
    %v134 = vpop.f32.mrb[0].mxu0
    %v135 = vadd.f32 %v36, %v134
    %v136 = vpop.f32.mrb[0].mxu0
    %137 = vmatprep.mubr.f32.mxu0 0.0
    %138 = vmatmul.mubr.f32.gmra.mrb[0].mxu0 %v46
    %v139 = vpop.f32.mrb[0].mxu0
    %v140 = vadd.f32 %v36, %v139
    %v141 = vpop.f32.mrb[0].mxu0
    %142 = vmatprep.mubr.f32.mxu0 0.0
    %143 = vmatmul.mubr.f32.gmra.mrb[0].mxu0 %v49
    %v144 = vpop.f32.mrb[0].mxu0
    %v145 = vadd.f32 %v36, %v144
    %v146 = vpop.f32.mrb[0].mxu0
    %147 = vmatprep.mubr.f32.mxu0 0.0
    %148 = vmatmul.mubr.f32.gmra.mrb[0].mxu0 %v52
    %v149 = vpop.f32.mrb[0].mxu0
    %v150 = vadd.f32 %v36, %v149
    %v151 = vpop.f32.mrb[0].mxu0
    %152 = vmatprep.mubr.f32.mxu0 0.0
    %153 = vmatmul.mubr.f32.gmra.mrb[0].mxu0 %v55
    %v154 = vpop.f32.mrb[0].mxu0
    %v155 = vadd.f32 %v36, %v154
    %v156 = vpop.f32.mrb[0].mxu0
    %157 = vmatprep.mubr.f32.mxu0 0.0
    %158 = vmatmul.mubr.f32.gmra.mrb[0].mxu0 %v58
    %v159 = vpop.f32.mrb[0].mxu0
    %v160 = vadd.f32 %v36, %v159
    %v161 = vpop.f32.mrb[0].mxu0
    %162 = vmatprep.mubr.f32.mxu0 0.0
    %163 = vmatmul.mubr.f32.gmra.mrb[0].mxu0 %v61
    %v164 = vpop.f32.mrb[0].mxu0
    %v165 = vadd.f32 %v36, %v164
    %v166 = vpop.f32.mrb[0].mxu0
    %167 = vdwg.mxu0
    %v168 = vmax.f32 %v130, 0.0
    %v169 = vmax.f32 %v135, 0.0
    %v170 = vmax.f32 %v140, 0.0
    %v171 = vmax.f32 %v145, 0.0
    %v172 = vmax.f32 %v150, 0.0
    %v173 = vmax.f32 %v155, 0.0
    %v174 = vmax.f32 %v160, 0.0
    %v175 = vmax.f32 %v165, 0.0
    %v176 = vld [vmem:[%s3] sm:$0xff]
    %v177 = vld [vmem:[%s3 + $0x8] sm:$0xff]
    %v178 = vld [vmem:[%s3 + $0x10] sm:$0xff]
    %v179 = vld [vmem:[%s3 + $0x18] sm:$0xff]
    %v180 = vld [vmem:[%s4] sm:$0x1]
    %v182 = vlaneseq
    %v183 = vshrl.u32 %v182, 7
    %v184 = vsub.s32 0, %v183
    %v185 = vrot.slane %v180, %v184
    %vm187 = vcmask 261120
    %v189 = vsel %vm187, %v168, 0
    %v192 = vsel %vm187, %v169, 0
    %v195 = vsel %vm187, %v170, 0
    %v198 = vsel %vm187, %v171, 0
    %v201 = vsel %vm187, %v172, 0
    %v204 = vsel %vm187, %v173, 0
    %v207 = vsel %vm187, %v174, 0
    %v210 = vsel %vm187, %v175, 0
    %212 = vmatprep.subr.mxu0 0.0
    %213 = vmatpush1.msra.mxu0 %v176
    %214 = vmatprep.subr.mxu0 0.0
    %215 = vmatpush1.msra.mxu0 %v177
    %216 = vmatprep.subr.mxu0 0.0
    %217 = vmatpush1.msra.mxu0 %v178
    %218 = vmatprep.subr.mxu0 0.0
    %219 = vmatpush1.msra.mxu0 %v179
    %220 = vmatprep.subr.mxu0 0.0
    %221 = vmatpush1.msra.mxu0 0.0
    %222 = vmatprep.subr.mxu0 0.0
    %223 = vmatpush1.msra.mxu0 0.0
    %224 = vmatprep.subr.mxu0 0.0
    %225 = vmatpush1.msra.mxu0 0.0
    %226 = vmatprep.subr.mxu0 0.0
    %227 = vmatpush1.msra.mxu0 0.0
    %228 = vmatprep.subr.mxu0 0.0
    %229 = vmatpush1.msra.mxu0 0.0
    %230 = vmatprep.subr.mxu0 0.0
    %231 = vmatpush1.msra.mxu0 0.0
    %232 = vmatprep.subr.mxu0 0.0
    %233 = vmatpush1.msra.mxu0 0.0
    %234 = vmatprep.subr.mxu0 0.0
    %235 = vmatpush1.msra.mxu0 0.0
    %236 = vmatprep.subr.mxu0 0.0
    %237 = vmatpush1.msra.mxu0 0.0
    %238 = vmatprep.subr.mxu0 0.0
    %239 = vmatpush1.msra.mxu0 0.0
    %240 = vmatprep.subr.mxu0 0.0
    %241 = vmatpush1.msra.mxu0 0.0
    %242 = vmatprep.subr.mxu0 0.0
    %243 = vmatpush1.msra.mxu0 0.0
    %244 = vmatprep.subr.mxu0 0.0
    %245 = vmatpush1.msra.mxu0 0.0
    %246 = vmatprep.subr.mxu0 0.0
    %247 = vmatpush1.msra.mxu0 0.0
    %248 = vmatprep.subr.mxu0 0.0
    %249 = vmatpush1.msra.mxu0 0.0
    %250 = vmatprep.subr.mxu0 0.0
    %251 = vmatpush1.msra.mxu0 0.0
    %252 = vmatprep.subr.mxu0 0.0
    %253 = vmatpush1.msra.mxu0 0.0
    %254 = vmatprep.subr.mxu0 0.0
    %255 = vmatpush1.msra.mxu0 0.0
    %256 = vmatprep.subr.mxu0 0.0
    %257 = vmatpush1.msra.mxu0 0.0
    %258 = vmatprep.subr.mxu0 0.0
    %259 = vmatpush1.msra.mxu0 0.0
    %260 = vmatprep.subr.mxu0 0.0
    %261 = vmatpush1.msra.mxu0 0.0
    %262 = vmatprep.subr.mxu0 0.0
    %263 = vmatpush1.msra.mxu0 0.0
    %264 = vmatprep.subr.mxu0 0.0
    %265 = vmatpush1.msra.mxu0 0.0
    %266 = vmatprep.subr.mxu0 0.0
    %267 = vmatpush1.msra.mxu0 0.0
    %268 = vmatprep.subr.mxu0 0.0
    %269 = vmatpush1.msra.mxu0 0.0
    %270 = vmatprep.subr.mxu0 0.0
    %271 = vmatpush1.msra.mxu0 0.0
    %272 = vmatprep.subr.mxu0 0.0
    %273 = vmatpush1.msra.mxu0 0.0
    %274 = vmatprep.subr.mxu0 0.0
    %275 = vmatpush1.msra.mxu0 0.0
    %276 = vmatprep.mubr.f32.mxu0 0.0
    %277 = vmatmul.mubr.f32.gmra.mrb[0].mxu0 %v189
    %v278 = vpop.f32.mrb[0].mxu0
    %v279 = vadd.f32 %v185, %v278
    %v280 = vpop.f32.mrb[0].mxu0
    %281 = vmatprep.mubr.f32.mxu0 0.0
    %282 = vmatmul.mubr.f32.gmra.mrb[0].mxu0 %v192
    %v283 = vpop.f32.mrb[0].mxu0
    %v284 = vadd.f32 %v185, %v283
    %v285 = vpop.f32.mrb[0].mxu0
    %286 = vmatprep.mubr.f32.mxu0 0.0
    %287 = vmatmul.mubr.f32.gmra.mrb[0].mxu0 %v195
    %v288 = vpop.f32.mrb[0].mxu0
    %v289 = vadd.f32 %v185, %v288
    %v290 = vpop.f32.mrb[0].mxu0
    %291 = vmatprep.mubr.f32.mxu0 0.0
    %292 = vmatmul.mubr.f32.gmra.mrb[0].mxu0 %v198
    %v293 = vpop.f32.mrb[0].mxu0
    %v294 = vadd.f32 %v185, %v293
    %v295 = vpop.f32.mrb[0].mxu0
    %296 = vmatprep.mubr.f32.mxu0 0.0
    %297 = vmatmul.mubr.f32.gmra.mrb[0].mxu0 %v201
    %v298 = vpop.f32.mrb[0].mxu0
    %v299 = vadd.f32 %v185, %v298
    %v300 = vpop.f32.mrb[0].mxu0
    %301 = vmatprep.mubr.f32.mxu0 0.0
    %302 = vmatmul.mubr.f32.gmra.mrb[0].mxu0 %v204
    %v303 = vpop.f32.mrb[0].mxu0
    %v304 = vadd.f32 %v185, %v303
    %v305 = vpop.f32.mrb[0].mxu0
    %306 = vmatprep.mubr.f32.mxu0 0.0
    %307 = vmatmul.mubr.f32.gmra.mrb[0].mxu0 %v207
    %v308 = vpop.f32.mrb[0].mxu0
    %v309 = vadd.f32 %v185, %v308
    %v310 = vpop.f32.mrb[0].mxu0
    %311 = vmatprep.mubr.f32.mxu0 0.0
    %312 = vmatmul.mubr.f32.gmra.mrb[0].mxu0 %v210
    %v313 = vpop.f32.mrb[0].mxu0
    %v314 = vadd.f32 %v185, %v313
    %v315 = vpop.f32.mrb[0].mxu0
    %316 = vdwg.mxu0
    %v317 = vmax.f32 %v279, 0.0
    %v318 = vmax.f32 %v284, 0.0
    %v319 = vmax.f32 %v289, 0.0
    %v320 = vmax.f32 %v294, 0.0
    %v321 = vmax.f32 %v299, 0.0
    %v322 = vmax.f32 %v304, 0.0
    %v323 = vmax.f32 %v309, 0.0
    %v324 = vmax.f32 %v314, 0.0
    %v325 = vadd.f32 %v317, %v318
    %v326 = vadd.f32 %v325, %v319
    %v327 = vadd.f32 %v326, %v320
    %v328 = vadd.f32 %v327, %v321
    %v329 = vadd.f32 %v328, %v322
    %v330 = vadd.f32 %v329, %v323
    %v331 = vadd.f32 %v330, %v324
    %v332 = vrot.slane %v331, 4
    %v333 = vadd.f32 %v331, %v332
    %v334 = vrot.slane %v333, 2
    %v335 = vadd.f32 %v333, %v334
    %v336 = vrot.slane %v335, 1
    %v337 = vadd.f32 %v335, %v336
    %v338 = vmul.f32 %v337, 0.015625
    %339 = vst [vmem:[#allocation2] sm:$0x1] %v338
    // Predicated region
    $region22: #{tpu_custom_call.1} parent=1 // pred_check
      _
    $region23: #{tpu_custom_call.1} parent=1 // pred_check_branch
      %341 = sbr.rel (0) target = $region25
    $region24: #{tpu_custom_call.1} parent=1 // pred_region
      %s343 = ssub.s32 16, 16
      %344 = vsyncadd [#allocation3], %s343
      %s346 = sshll.u32 [#allocation2], 4
      %s347 = int_to_ptr.vmem [resolvable:$true] %s346
      %349 = dma.vmem_to_hbm [thread:$0]  %s347, 16, %s5, [#allocation3]
    $region25: #{tpu_custom_call.1} parent=1 // pred_fallthru
      _
    // Predicated region
    $region26: #{tpu_custom_call.1} parent=1 // pred_check
      _
    $region27: #{tpu_custom_call.1} parent=1 // pred_check_branch
      %351 = sbr.rel (0) target = $region29
    $region28: #{tpu_custom_call.1} parent=1 // pred_region
      %352 = dma.done [#allocation3], 16
    $region29: #{tpu_custom_call.1} parent=1 // pred_fallthru
      _
    %353 = vsyncpa [#allocation3], 1

</llo_original>
